<compile_context>
chip_gen: v7x
topology: tpu7x:2x2x1
jax: 0.10.0
libtpu: 0.0.40
codegen_flags: <defaults>
</compile_context>

<pallas_src>
import jax
import jax.numpy as jnp
from jax.experimental import pallas as pl
from jax.experimental.pallas import tpu as pltpu


def _im2col_3x3_t(x):
    """x: [B, C, H, W] (3x3 conv, padding=1, stride=1) -> [B, C*9, H*W].

    Row ordering of the C*9 axis is c*9 + (3*di + dj), matching the stored
    conv-weight layout.  Pixels sit on the trailing (lane) axis.
    """
    B, C, H, W = x.shape
    xp = jnp.pad(x, ((0, 0), (0, 0), (1, 1), (1, 1)))
    cols = [xp[:, :, di:di + H, dj:dj + W] for di in range(3) for dj in range(3)]
    p = jnp.stack(cols, axis=2)                 # [B, C, 9, H, W]
    return p.reshape(B, C * 9, H * W)


def _pick_hw_tile(hw, cap=1024):
    """Largest multiple of 128 dividing hw (capped); else the full axis.

    v5e/v6e (128 MiB VMEM) tolerate a large cap; on v7x (64 MiB VMEM) keep the
    cap modest so double-buffered patch tiles + scratch stay inside scoped VMEM.
    """
    best = hw
    t = 128
    while t <= min(hw, cap):
        if hw % t == 0:
            best = t
        t += 128
    return best


def rotnet_forward(x, wc, bc, wp, bp, hw_tile=None):
    """Reproduces RotNet.forward (training branch): returns (out, batch_rot_y).

    x:  [B, C, H, W] f32
    wc: [C*9, F] conv weight, pre-reshaped (row = c*9 + 3*di + dj)
    bc: [1, F]   conv bias
    wp: [F, P]   projector weight
    bp: [1, P]   projector bias
    """
    B, C, H, W = x.shape
    HW, CKK = H * W, C * 9
    F_hidden = wc.shape[1]
    P = wp.shape[1]
    F4, P4 = 4 * F_hidden, 4 * P

    # Rotation labels (torch uses .long() -> int64; int32 here, same values).
    batch_rot_y = jnp.concatenate(
        [jnp.full((B,), r, dtype=jnp.int32) for r in range(4)], axis=0)

    # --- fold the 4 input rotations into rotated conv weights (exact) ---
    wc_taps = wc.reshape(C, 3, 3, F_hidden)
    wc_rots = [jnp.rot90(wc_taps, k=-r, axes=(1, 2)).reshape(CKK, F_hidden)
               for r in range(4)]
    # Stack along output features -> one matmul computes all 4 rotation branches.
    wct_stack = jnp.concatenate(wc_rots, axis=1).T.astype(jnp.bfloat16)   # [4F, CKK]
    bc_t = jnp.tile(bc.reshape(F_hidden, 1), (4, 1)).astype(jnp.float32)  # [4F, 1]
    # Block-diagonal projector (kron(I4, Wp^T)) on the stacked pooled features.
    wpt_stack = jnp.kron(jnp.eye(4, dtype=jnp.float32),
                         wp.T.astype(jnp.float32))                        # [4P, 4F]
    bp_t = jnp.tile(bp.reshape(P, 1), (4, 1)).astype(jnp.float32)         # [4P, 1]

    # --- im2col ONCE on the un-rotated input, lane-dense layout, bf16 ---
    patches_t = _im2col_3x3_t(x.astype(jnp.bfloat16))                     # [B, CKK, HW]

    if hw_tile is None:
        hw_tile = _pick_hw_tile(HW)
    assert HW % hw_tile == 0, "hw_tile must divide H*W"
    n_hw = HW // hw_tile
    inv_hw = 1.0 / float(HW)

    def kernel(p_ref, wct_ref, bct_ref, wpt_ref, bpt_ref, out_ref, acc_ref):
        # p_ref:   [1, CKK, hw_tile] bf16     wct_ref: [4F, CKK] bf16
        # bct_ref: [4F, 1] f32                wpt_ref: [4P, 4F] f32
        # bpt_ref: [4P, 1] f32                out_ref: [1, 4P, 1] f32
        # acc_ref: [4F, 1] f32 VMEM scratch (per-image pooled-sum accumulator)
        k = pl.program_id(1)

        @pl.when(k == 0)
        def _init():
            acc_ref[...] = jnp.zeros_like(acc_ref)

        # conv-as-matmul for all 4 rotation branches at once (MXU, f32 accum).
        h = jnp.dot(wct_ref[...], p_ref[0],
                    preferred_element_type=jnp.float32)         # [4F, hw_tile]
        h = jnp.maximum(h + bct_ref[...], 0.0)                  # bias + ReLU (f32)
        acc_ref[...] += jnp.sum(h, axis=1, keepdims=True)       # partial spatial sum

        @pl.when(k == pl.num_programs(1) - 1)
        def _finalize():
            pooled = acc_ref[...] * inv_hw                      # global average pool
            logits = jnp.dot(wpt_ref[...], pooled,
                             preferred_element_type=jnp.float32) + bpt_ref[...]
            out_ref[...] = logits[None].astype(out_ref.dtype)   # [1, 4P, 1]

    out_t = pl.pallas_call(
        kernel,
        out_shape=jax.ShapeDtypeStruct((B, P4, 1), jnp.float32),
        grid=(B, n_hw),
        in_specs=[
            pl.BlockSpec((1, CKK, hw_tile), lambda b, k: (b, 0, k)),
            pl.BlockSpec((F4, CKK), lambda b, k: (0, 0)),
            pl.BlockSpec((F4, 1), lambda b, k: (0, 0)),
            pl.BlockSpec((P4, F4), lambda b, k: (0, 0)),
            pl.BlockSpec((P4, 1), lambda b, k: (0, 0)),
        ],
        out_specs=pl.BlockSpec((1, P4, 1), lambda b, k: (b, 0, 0)),
        scratch_shapes=[pltpu.VMEM((F4, 1), jnp.float32)],
        compiler_params=pltpu.CompilerParams(
            dimension_semantics=("parallel", "arbitrary"),
            vmem_limit_bytes=32 * 1024 * 1024,
        ),
    )(patches_t, wct_stack, bc_t, wpt_stack, bp_t)

    # [B, 4P, 1] -> [4B, P] with rotation-major row order (matches torch.cat).
    out = out_t[:, :, 0].reshape(B, 4, P).transpose(1, 0, 2).reshape(4 * B, P)
    return out, batch_rot_y


def _reference_forward(x, wc, bc, wp, bp):
    """Pure-JAX f32 reference that literally rotates the inputs (PyTorch path)."""
    rots = [jnp.rot90(x, k=r, axes=(2, 3)) for r in range(4)]
    bx = jnp.concatenate(rots, axis=0)                          # [4B, C, H, W]
    patches = _im2col_3x3_t(bx)                                 # [4B, C*9, H*W]
    h = jnp.einsum("bkp,kf->bpf", patches, wc,
                   precision=jax.lax.Precision.HIGHEST) + bc
    h = jnp.maximum(h, 0.0)
    pooled = jnp.mean(h, axis=1)                                # [4B, F]
    return jnp.dot(pooled, wp, precision=jax.lax.Precision.HIGHEST) + bp


if __name__ == "__main__":
    key = jax.random.PRNGKey(0)
    kx, k1, k2, k3, k4 = jax.random.split(key, 5)

    B, C, H, W = 2, 4, 16, 16
    F_hidden, P = 32, 4

    x = jax.random.normal(kx, (B, C, H, W), dtype=jnp.float32)
    # Deterministic synthetic parameters (conv weight stored pre-reshaped to
    # [C*9, F], row ordering c*9 + 3*di + dj — matches _im2col_3x3_t).
    wc = jax.random.normal(k1, (C * 9, F_hidden), jnp.float32) * (1.0 / jnp.sqrt(C * 9))
    bc = jax.random.normal(k2, (1, F_hidden), jnp.float32) * 0.01
    wp = jax.random.normal(k3, (F_hidden, P), jnp.float32) * (1.0 / jnp.sqrt(F_hidden))
    bp = jax.random.normal(k4, (1, P), jnp.float32) * 0.01

    # hw_tile=128 -> 2 spatial tiles per image: exercises the accumulate path.
    out, batch_rot_y = rotnet_forward(x, wc, bc, wp, bp, hw_tile=128)
    jax.block_until_ready((out, batch_rot_y))

    assert out.shape == (4 * B, P)
    assert batch_rot_y.shape == (4 * B,)

    # Validate against the literal rotate-the-input f32 reference (bf16 matmul
    # operands in the kernel -> loosened tolerance).
    ref = _reference_forward(x, wc, bc, wp, bp)
    assert float(jnp.max(jnp.abs(out - ref))) < 5e-2

    print("KERNEL_OK")
</pallas_src>

<mosaic_0001>
module attributes {stable_mosaic.version = 11 : i64} {
  func.func @kernel(%arg0: i32, %arg1: i32, %arg2: memref<1x36x128xbf16, #tpu.memory_space<vmem>>, %arg3: memref<128x36xbf16, #tpu.memory_space<vmem>>, %arg4: memref<128x1xf32, #tpu.memory_space<vmem>>, %arg5: memref<16x128xf32, #tpu.memory_space<vmem>>, %arg6: memref<16x1xf32, #tpu.memory_space<vmem>>, %arg7: memref<1x16x1xf32, #tpu.memory_space<vmem>>, %arg8: memref<128x1xf32, #tpu.memory_space<vmem>>) attributes {dimension_semantics = [#tpu.dimension_semantics<parallel>, #tpu.dimension_semantics<arbitrary>], iteration_bounds = array<i64: 2, 2>, scalar_prefetch = 0 : i64, scratch_operands = 1 : i64, tpu.core_type = #tpu.core_type<tc>, window_params = [{transform_indices = @transform_0, window_bounds = array<i64: 1, 36, 128>}, {pipeline_mode = #tpu.pipeline_mode<synchronous>, transform_indices = @transform_1, window_bounds = array<i64: 128, 36>}, {pipeline_mode = #tpu.pipeline_mode<synchronous>, transform_indices = @transform_2, window_bounds = array<i64: 128, 1>}, {pipeline_mode = #tpu.pipeline_mode<synchronous>, transform_indices = @transform_3, window_bounds = array<i64: 16, 128>}, {pipeline_mode = #tpu.pipeline_mode<synchronous>, transform_indices = @transform_4, window_bounds = array<i64: 16, 1>}, {transform_indices = @transform_5, window_bounds = array<i64: 1, 16, 1>}]} {
    %c0_i32 = arith.constant 0 : i32
    %0 = arith.cmpi eq, %arg1, %c0_i32 : i32
    %1 = arith.extui %0 : i1 to i32
    %c0_i32_0 = arith.constant 0 : i32
    %2 = arith.cmpi ne, %1, %c0_i32_0 : i32
    scf.if %2 {
      %cst_14 = arith.constant 0.000000e+00 : f32
      %20 = vector.broadcast %cst_14 : f32 to vector<128x1xf32>
      %c0_15 = arith.constant 0 : index
      %c0_16 = arith.constant 0 : index
      %21 = vector.load %arg8[%c0_15, %c0_16] : memref<128x1xf32, #tpu.memory_space<vmem>>, vector<128x1xf32>
      tpu.vector_store %arg8[%c0_15, %c0_16], %20 {strides = array<i32>} : memref<128x1xf32, #tpu.memory_space<vmem>>, vector<128x1xf32>,
    } else {
    }
    %c0 = arith.constant 0 : index
    %c0_1 = arith.constant 0 : index
    %3 = vector.load %arg3[%c0, %c0_1] : memref<128x36xbf16, #tpu.memory_space<vmem>>, vector<128x36xbf16>
    %c0_2 = arith.constant 0 : index
    %c0_3 = arith.constant 0 : index
    %c0_4 = arith.constant 0 : index
    %4 = vector.load %arg2[%c0_2, %c0_3, %c0_4] : memref<1x36x128xbf16, #tpu.memory_space<vmem>>, vector<1x36x128xbf16>
    %5 = vector.shape_cast %4 : vector<1x36x128xbf16> to vector<36x128xbf16>
    %cst = arith.constant dense<0.000000e+00> : vector<128x128xf32>
    %6 = tpu.matmul %3, %5, %cst {dimension_numbers = #tpu.dot_dimension_numbers<[1], [0], [0], [1], [0, 0, 1, 1], [], []>} : vector<128x36xbf16>, vector<36x128xbf16>, vector<128x128xf32> -> vector<128x128xf32>
    %c0_5 = arith.constant 0 : index
    %c0_6 = arith.constant 0 : index
    %7 = vector.load %arg4[%c0_5, %c0_6] : memref<128x1xf32, #tpu.memory_space<vmem>>, vector<128x1xf32>
    %8 = vector.broadcast %7 : vector<128x1xf32> to vector<128x128xf32>
    %9 = arith.addf %6, %8 : vector<128x128xf32>
    %cst_7 = arith.constant 0.000000e+00 : f32
    %10 = vector.broadcast %cst_7 : f32 to vector<128x128xf32>
    %11 = arith.maximumf %9, %10 : vector<128x128xf32>
    %c0_8 = arith.constant 0 : index
    %c0_9 = arith.constant 0 : index
    %12 = vector.load %arg8[%c0_8, %c0_9] : memref<128x1xf32, #tpu.memory_space<vmem>>, vector<128x1xf32>
    %cst_10 = arith.constant dense<0.000000e+00> : vector<128xf32>
    %13 = vector.multi_reduction <add>, %11, %cst_10 [1] : vector<128x128xf32> to vector<128xf32>
    %14 = vector.shape_cast %13 : vector<128xf32> to vector<128x1xf32>
    %15 = arith.addf %12, %14 : vector<128x1xf32>
    %c0_11 = arith.constant 0 : index
    %c0_12 = arith.constant 0 : index
    %16 = vector.load %arg8[%c0_11, %c0_12] : memref<128x1xf32, #tpu.memory_space<vmem>>, vector<128x1xf32>
    tpu.vector_store %arg8[%c0_11, %c0_12], %15 {strides = array<i32>} : memref<128x1xf32, #tpu.memory_space<vmem>>, vector<128x1xf32>,
    %c1_i32 = arith.constant 1 : i32
    %17 = arith.cmpi eq, %arg1, %c1_i32 : i32
    %18 = arith.extui %17 : i1 to i32
    %c0_i32_13 = arith.constant 0 : i32
    %19 = arith.cmpi ne, %18, %c0_i32_13 : i32
    scf.if %19 {
      %c0_14 = arith.constant 0 : index
      %c0_15 = arith.constant 0 : index
      %20 = vector.load %arg8[%c0_14, %c0_15] : memref<128x1xf32, #tpu.memory_space<vmem>>, vector<128x1xf32>
      %cst_16 = arith.constant 3.906250e-03 : f32
      %21 = vector.broadcast %cst_16 : f32 to vector<128x1xf32>
      %22 = arith.mulf %20, %21 : vector<128x1xf32>
      %c0_17 = arith.constant 0 : index
      %c0_18 = arith.constant 0 : index
      %23 = vector.load %arg5[%c0_17, %c0_18] : memref<16x128xf32, #tpu.memory_space<vmem>>, vector<16x128xf32>
      %cst_19 = arith.constant dense<0.000000e+00> : vector<16x1xf32>
      %24 = tpu.matmul %23, %22, %cst_19 {dimension_numbers = #tpu.dot_dimension_numbers<[1], [0], [0], [1], [0, 0, 1, 1], [], []>} : vector<16x128xf32>, vector<128x1xf32>, vector<16x1xf32> -> vector<16x1xf32>
      %c0_20 = arith.constant 0 : index
      %c0_21 = arith.constant 0 : index
      %25 = vector.load %arg6[%c0_20, %c0_21] : memref<16x1xf32, #tpu.memory_space<vmem>>, vector<16x1xf32>
      %26 = arith.addf %24, %25 : vector<16x1xf32>
      %27 = vector.shape_cast %26 : vector<16x1xf32> to vector<1x16x1xf32>
      %c0_22 = arith.constant 0 : index
      %c0_23 = arith.constant 0 : index
      %c0_24 = arith.constant 0 : index
      %28 = vector.load %arg7[%c0_22, %c0_23, %c0_24] : memref<1x16x1xf32, #tpu.memory_space<vmem>>, vector<1x16x1xf32>
      tpu.vector_store %arg7[%c0_22, %c0_23, %c0_24], %27 {strides = array<i32>} : memref<1x16x1xf32, #tpu.memory_space<vmem>>, vector<1x16x1xf32>,
    } else {
    }
    return
  }
  func.func @transform_0(%arg0: i32, %arg1: i32) -> (i32, i32, i32) {
    %c0_i32 = arith.constant 0 : i32
    %c0_i32_0 = arith.constant 0 : i32
    return %arg0, %c0_i32, %arg1 : i32, i32, i32
  }
  func.func @transform_1(%arg0: i32, %arg1: i32) -> (i32, i32) {
    %c0_i32 = arith.constant 0 : i32
    %c0_i32_0 = arith.constant 0 : i32
    %c0_i32_1 = arith.constant 0 : i32
    return %c0_i32, %c0_i32_0 : i32, i32
  }
  func.func @transform_2(%arg0: i32, %arg1: i32) -> (i32, i32) {
    %c0_i32 = arith.constant 0 : i32
    %c0_i32_0 = arith.constant 0 : i32
    %c0_i32_1 = arith.constant 0 : i32
    return %c0_i32, %c0_i32_0 : i32, i32
  }
  func.func @transform_3(%arg0: i32, %arg1: i32) -> (i32, i32) {
    %c0_i32 = arith.constant 0 : i32
    %c0_i32_0 = arith.constant 0 : i32
    %c0_i32_1 = arith.constant 0 : i32
    return %c0_i32, %c0_i32_0 : i32, i32
  }
  func.func @transform_4(%arg0: i32, %arg1: i32) -> (i32, i32) {
    %c0_i32 = arith.constant 0 : i32
    %c0_i32_0 = arith.constant 0 : i32
    %c0_i32_1 = arith.constant 0 : i32
    return %c0_i32, %c0_i32_0 : i32, i32
  }
  func.func @transform_5(%arg0: i32, %arg1: i32) -> (i32, i32, i32) {
    %c0_i32 = arith.constant 0 : i32
    %c0_i32_0 = arith.constant 0 : i32
    %c0_i32_1 = arith.constant 0 : i32
    return %arg0, %c0_i32, %c0_i32_0 : i32, i32, i32
  }
}

</mosaic_0001>

<llo_original>
// kernel: tpu_custom_call.1
$region0: #{tpu_custom_call.1}
  #allocation0 [shape = 'u32[]', space=smem, size = 0x4, offset = 0x4, fixed_abs, tag = 'smem constant byte address 0x4 - core index']
  #allocation1 [shape = 'u32[144,128]{1,0:T(1,128)}', space=vmem, size = 0x12000, scoped, tag = 'internal scratch']
  #allocation2 [shape = 'f32[128,1]{1,0:T(8,128)}', space=vmem, size = 0x10000, scoped, tag = 'scratch operand']
  %s0 = inlined_call_operand.vmem [shape: bf16[2,36,256], index: 0, kind: input, shape index: {}]
  %s1 = inlined_call_operand.vmem [shape: bf16[128,36], index: 1, kind: input, shape index: {}]
  %s2 = inlined_call_operand.vmem [shape: f32[128,1], index: 2, kind: input, shape index: {}]
  %s3 = inlined_call_operand.vmem [shape: f32[16,128], index: 3, kind: input, shape index: {}]
  %s4 = inlined_call_operand.vmem [shape: f32[16,1], index: 4, kind: input, shape index: {}]
  %s5 = inlined_call_operand.vmem [shape: f32[2,16,1], index: 5, kind: output, shape index: {}]
  %s6 = sld [smem:[#allocation0]]
  $region102: #{tpu_custom_call.1} parent=0
    _
  %s8 = ssub.s32 1, %s6
  %s9 = scalar_select 0, %s8, %s6
  $region1: #{tpu_custom_call.1} parent=0
    #allocation3 [shape = 'u8[20480]{0}', space=vmem, size = 0x5000, scoped, tag = 'input window, operand 0']
    loop: start=0, step=1, limit=6
    $region2: #{tpu_custom_call.1} parent=1 // loop_pre_header
      _
    $region3: #{tpu_custom_call.1} parent=1 // loop_header
      %s11 = sphi 0, %s15
      %p12 = scmp.ge.s32.totalorder %s11, 6
      %s18 = sphi 0, %s30
      %s19 = sphi 0, %s26
      %s20 = sphi 0, %s18
      %s21 = sphi 0, %s19
      %s22 = sphi 0, %s20
      %s23 = sphi 0, %s21
      %s35 = sphi 0, %s37
      %s38 = sphi 0, %s35
      %s39 = sphi 0, %s38
      %s55 = sphi 0, %s39
      %s59 = sphi 0, %s59
      %s61 = sphi 0, %s59
      %s62 = sphi 0, %s61
      %s76 = sphi 0, %s62
      %s80 = sphi 0, %s80
      %s82 = sphi 0, %s80
      %s83 = sphi 0, %s82
      %s97 = sphi 0, %s83
      %s101 = sphi 0, %s101
      %s103 = sphi 0, %s101
      %s104 = sphi 0, %s103
      %s118 = sphi 0, %s104
      %s122 = sphi 0, %s122
      %s124 = sphi 0, %s122
      %s125 = sphi 0, %s124
      %s139 = sphi 0, %s125
      %s145 = sphi 0, %s147
      %s148 = sphi 0, %s145
      %s149 = sphi 0, %s148
      %s165 = sphi 0, %s149
    $region4: #{tpu_custom_call.1} parent=1 // loop_header_branch
      %14 = sbr.rel (%p12) target = $region8
    $region5: #{tpu_custom_call.1} parent=1 // loop_body
      %s16 = ssub.s32 %s11, 1
      %s17 = ssub.s32 %s11, 2
      %s24 = sadd.s32 1, %s19
      %p25 = scmp.ge.s32.totalorder %s24, 2
      %s26 = scalar_select %p25, 0, %s24
      %s27 = sadd.s32 1, %s18
      %s28 = scalar_select %p25, %s27, %s18
      %p29 = scmp.ge.s32.totalorder %s28, 2
      %s30 = scalar_select %p29, 0, %s28
      %s31 = ssub.s32 %s18, %s30
      %s32 = ssub.s32 %s19, %s26
      %s33 = sor.u32 %s31, %s32
      %p34 = scmp.eq.s32.totalorder %s33, 0
      %s36 = sadd.s32 %s35, 1
      %s37 = scalar_select %p34, %s35, %s36
      %p40 = pneg %p34
      %p41 = scmp.eq.s32.totalorder %s11, 3
      %p42 = por %p40, %p41
      %p43 = scmp.ne.s32.totalorder %s35, %s38
      %p44 = scmp.eq.s32.totalorder %s11, 0
      %p45 = por %p43, %p44
      %p46 = scmp.ne.s32.totalorder %s35, %s38
      %p47 = scmp.eq.s32.totalorder %s16, 3
      %p48 = por %p46, %p47
      %p49 = scmp.ne.s32.totalorder %s38, %s39
      %p50 = scmp.eq.s32.totalorder %s16, 0
      %p51 = por %p49, %p50
      %p52 = scmp.ne.s32.totalorder %s38, %s39
      %p53 = scmp.eq.s32.totalorder %s17, 3
      %p54 = por %p52, %p53
      %p56 = scmp.ne.s32.totalorder %s39, %s55
      %p57 = scmp.eq.s32.totalorder %s17, 0
      %p58 = por %p56, %p57
      %s60 = sadd.s32 %s59, 1
      %p63 = scmp.eq.s32.totalorder %s11, 3
      %p64 = scmp.ne.s32.totalorder %s59, %s61
      %p65 = scmp.eq.s32.totalorder %s11, 0
      %p66 = por %p64, %p65
      %p67 = scmp.ne.s32.totalorder %s59, %s61
      %p68 = scmp.eq.s32.totalorder %s16, 3
      %p69 = por %p67, %p68
      %p70 = scmp.ne.s32.totalorder %s61, %s62
      %p71 = scmp.eq.s32.totalorder %s16, 0
      %p72 = por %p70, %p71
      %p73 = scmp.ne.s32.totalorder %s61, %s62
      %p74 = scmp.eq.s32.totalorder %s17, 3
      %p75 = por %p73, %p74
      %p77 = scmp.ne.s32.totalorder %s62, %s76
      %p78 = scmp.eq.s32.totalorder %s17, 0
      %p79 = por %p77, %p78
      %s81 = sadd.s32 %s80, 1
      %p84 = scmp.eq.s32.totalorder %s11, 3
      %p85 = scmp.ne.s32.totalorder %s80, %s82
      %p86 = scmp.eq.s32.totalorder %s11, 0
      %p87 = por %p85, %p86
      %p88 = scmp.ne.s32.totalorder %s80, %s82
      %p89 = scmp.eq.s32.totalorder %s16, 3
      %p90 = por %p88, %p89
      %p91 = scmp.ne.s32.totalorder %s82, %s83
      %p92 = scmp.eq.s32.totalorder %s16, 0
      %p93 = por %p91, %p92
      %p94 = scmp.ne.s32.totalorder %s82, %s83
      %p95 = scmp.eq.s32.totalorder %s17, 3
      %p96 = por %p94, %p95
      %p98 = scmp.ne.s32.totalorder %s83, %s97
      %p99 = scmp.eq.s32.totalorder %s17, 0
      %p100 = por %p98, %p99
      %s102 = sadd.s32 %s101, 1
      %p105 = scmp.eq.s32.totalorder %s11, 3
      %p106 = scmp.ne.s32.totalorder %s101, %s103
      %p107 = scmp.eq.s32.totalorder %s11, 0
      %p108 = por %p106, %p107
      %p109 = scmp.ne.s32.totalorder %s101, %s103
      %p110 = scmp.eq.s32.totalorder %s16, 3
      %p111 = por %p109, %p110
      %p112 = scmp.ne.s32.totalorder %s103, %s104
      %p113 = scmp.eq.s32.totalorder %s16, 0
      %p114 = por %p112, %p113
      %p115 = scmp.ne.s32.totalorder %s103, %s104
      %p116 = scmp.eq.s32.totalorder %s17, 3
      %p117 = por %p115, %p116
      %p119 = scmp.ne.s32.totalorder %s104, %s118
      %p120 = scmp.eq.s32.totalorder %s17, 0
      %p121 = por %p119, %p120
      %s123 = sadd.s32 %s122, 1
      %p126 = scmp.eq.s32.totalorder %s11, 3
      %p127 = scmp.ne.s32.totalorder %s122, %s124
      %p128 = scmp.eq.s32.totalorder %s11, 0
      %p129 = por %p127, %p128
      %p130 = scmp.ne.s32.totalorder %s122, %s124
      %p131 = scmp.eq.s32.totalorder %s16, 3
      %p132 = por %p130, %p131
      %p133 = scmp.ne.s32.totalorder %s124, %s125
      %p134 = scmp.eq.s32.totalorder %s16, 0
      %p135 = por %p133, %p134
      %p136 = scmp.ne.s32.totalorder %s124, %s125
      %p137 = scmp.eq.s32.totalorder %s17, 3
      %p138 = por %p136, %p137
      %p140 = scmp.ne.s32.totalorder %s125, %s139
      %p141 = scmp.eq.s32.totalorder %s17, 0
      %p142 = por %p140, %p141
      %s143 = ssub.s32 %s18, %s30
      %p144 = scmp.eq.s32.totalorder %s143, 0
      %s146 = sadd.s32 %s145, 1
      %s147 = scalar_select %p144, %s145, %s146
      %p150 = pneg %p144
      %p151 = scmp.eq.s32.totalorder %s11, 3
      %p152 = por %p150, %p151
      %p153 = scmp.ne.s32.totalorder %s145, %s148
      %p154 = scmp.eq.s32.totalorder %s11, 0
      %p155 = por %p153, %p154
      %p156 = scmp.ne.s32.totalorder %s145, %s148
      %p157 = scmp.eq.s32.totalorder %s16, 3
      %p158 = por %p156, %p157
      %p159 = scmp.ne.s32.totalorder %s148, %s149
      %p160 = scmp.eq.s32.totalorder %s16, 0
      %p161 = por %p159, %p160
      %p162 = scmp.ne.s32.totalorder %s148, %s149
      %p163 = scmp.eq.s32.totalorder %s17, 3
      %p164 = por %p162, %p163
      %p166 = scmp.ne.s32.totalorder %s149, %s165
      %p167 = scmp.eq.s32.totalorder %s17, 0
      %p168 = por %p166, %p167
      %p169 = scmp.le.s32.totalorder 1, %s11
      %p170 = scmp.lt.s32.totalorder %s11, 5
      %p171 = pnand %p169, %p170
      %p172 = pneg %p171
      // Predicated region
      $region9: #{tpu_custom_call.1} parent=5 // pred_check
        _
      $region10: #{tpu_custom_call.1} parent=5 // pred_check_branch
        %174 = sbr.rel (%p171) target = $region12
      $region11: #{tpu_custom_call.1} parent=5 // pred_region
        %s175 = ssub.s32 %s11, 1
        // Predicated region
        $region13: #{tpu_custom_call.1} parent=11 // pred_check
          %p176 = pneg %p72
        $region14: #{tpu_custom_call.1} parent=11 // pred_check_branch
          %178 = sbr.rel (%p176) target = $region16
        $region15: #{tpu_custom_call.1} parent=11 // pred_region
          _
        $region16: #{tpu_custom_call.1} parent=11 // pred_fallthru
          _
        // Predicated region
        $region17: #{tpu_custom_call.1} parent=11 // pred_check
          %p179 = pneg %p93
        $region18: #{tpu_custom_call.1} parent=11 // pred_check_branch
          %181 = sbr.rel (%p179) target = $region20
        $region19: #{tpu_custom_call.1} parent=11 // pred_region
          _
        $region20: #{tpu_custom_call.1} parent=11 // pred_fallthru
          _
        // Predicated region
        $region21: #{tpu_custom_call.1} parent=11 // pred_check
          %p182 = pneg %p114
        $region22: #{tpu_custom_call.1} parent=11 // pred_check_branch
          %184 = sbr.rel (%p182) target = $region24
        $region23: #{tpu_custom_call.1} parent=11 // pred_region
          _
        $region24: #{tpu_custom_call.1} parent=11 // pred_fallthru
          _
        // Predicated region
        $region25: #{tpu_custom_call.1} parent=11 // pred_check
          %p185 = pneg %p135
        $region26: #{tpu_custom_call.1} parent=11 // pred_check_branch
          %187 = sbr.rel (%p185) target = $region28
        $region27: #{tpu_custom_call.1} parent=11 // pred_region
          _
        $region28: #{tpu_custom_call.1} parent=11 // pred_fallthru
          _
      $region12: #{tpu_custom_call.1} parent=5 // pred_fallthru
        _
      %p188 = scmp.lt.s32.totalorder %s11, 4
      // Predicated region
      $region29: #{tpu_custom_call.1} parent=5 // pred_check
        %p189 = pneg %p188
      $region30: #{tpu_custom_call.1} parent=5 // pred_check_branch
        %191 = sbr.rel (%p189) target = $region32
      $region31: #{tpu_custom_call.1} parent=5 // pred_region
        // Predicated region
        $region33: #{tpu_custom_call.1} parent=31 // pred_check
          %p192 = pneg %p45
        $region34: #{tpu_custom_call.1} parent=31 // pred_check_branch
          %194 = sbr.rel (%p192) target = $region36
        $region35: #{tpu_custom_call.1} parent=31 // pred_region
          %s195 = sand.u32 %s35, 1
          %s196 = sand.u32 %s35, 1
          %s197 = smul.addr %s196, 20
          %s198 = scalar_lea.vmem [#allocation3], %s197
          %s199 = smul.addr %s18, 10
          %s200 = sadd.s32 %s19, %s199
          %s201 = smul.addr %s200, 4
          %s202 = scalar_lea.vmem %s0, %s201
          // Predicated region
          $region37: #{tpu_custom_call.1} parent=35 // pred_check
            _
          $region38: #{tpu_custom_call.1} parent=35 // pred_check_branch
            %204 = sbr.rel (0) target = $region40
          $region39: #{tpu_custom_call.1} parent=35 // pred_region
            // Predicated region
            $region41: #{tpu_custom_call.1} parent=39 // pred_check
              _
            $region42: #{tpu_custom_call.1} parent=39 // pred_check_branch
              %206 = sbr.rel target = $region44
            $region43: #{tpu_custom_call.1} parent=39 // pred_region
              // Predicated region
              $region56: #{tpu_custom_call.1} parent=43 // pred_check
                _
              $region57: #{tpu_custom_call.1} parent=43 // pred_check_branch
                %229 = sbr.rel (0) target = $region59
              $region58: #{tpu_custom_call.1} parent=43 // pred_region
                loop: start=0, step=1, limit=1
                $region60: #{tpu_custom_call.1} parent=58 // loop_pre_header
                  _
                $region61: #{tpu_custom_call.1} parent=58 // loop_header
                  %s231 = sphi 0, %s235
                  %p232 = scmp.ge.s32.totalorder %s231, 1
                  %s236 = sphi %s202, %s202
                  %s237 = sphi %s198, %s198
                $region62: #{tpu_custom_call.1} parent=58 // loop_header_branch
                  %234 = sbr.rel (%p232) target = $region66
                $region63: #{tpu_custom_call.1} parent=58 // loop_body
                  _
                $region64: #{tpu_custom_call.1} parent=58 // loop_footer
                  %s235 = sadd.s32 1, %s231
                $region65: #{tpu_custom_call.1} parent=58 // loop_footer_branch
                  %230 = sbr.rel target = $region61
                $region66: #{tpu_custom_call.1} parent=58 // loop_exit
                  _
                loop: start=0, step=1, limit=1
                $region67: #{tpu_custom_call.1} parent=58 // loop_pre_header
                  _
                $region68: #{tpu_custom_call.1} parent=58 // loop_header
                  %s240 = sphi 0, %s244
                  %p241 = scmp.ge.s32.totalorder %s240, 1
                  %s245 = sphi %s202, %s202
                  %s246 = sphi %s198, %s198
                $region69: #{tpu_custom_call.1} parent=58 // loop_header_branch
                  %243 = sbr.rel (%p241) target = $region73
                $region70: #{tpu_custom_call.1} parent=58 // loop_body
                  %v247 = vld [vmem:[%s245] sm:$0xf]
                  %248 = vst [vmem:[%s246] sm:$0xf] %v247
                  %v249 = vld [vmem:[%s245 + $0x8] sm:$0xf]
                  %250 = vst [vmem:[%s246 + $0x4] sm:$0xf] %v249
                  %v251 = vld [vmem:[%s245 + $0x10] sm:$0xf]
                  %252 = vst [vmem:[%s246 + $0x8] sm:$0xf] %v251
                  %v253 = vld [vmem:[%s245 + $0x18] sm:$0xf]
                  %254 = vst [vmem:[%s246 + $0xc] sm:$0xf] %v253
                  %v255 = vld [vmem:[%s245 + $0x20] sm:$0xf]
                  %256 = vst [vmem:[%s246 + $0x10] sm:$0xf] %v255
                $region71: #{tpu_custom_call.1} parent=58 // loop_footer
                  %s244 = sadd.s32 1, %s240
                $region72: #{tpu_custom_call.1} parent=58 // loop_footer_branch
                  %239 = sbr.rel target = $region68
                $region73: #{tpu_custom_call.1} parent=58 // loop_exit
                  _
              $region59: #{tpu_custom_call.1} parent=43 // pred_fallthru
                _
            $region44: #{tpu_custom_call.1} parent=39 // pred_fallthru
              _
            // Predicated region
            $region45: #{tpu_custom_call.1} parent=39 // pred_check
              _
            $region46: #{tpu_custom_call.1} parent=39 // pred_check_branch
              %208 = sbr.rel (0) target = $region48
            $region47: #{tpu_custom_call.1} parent=39 // pred_region
              loop: start=0, step=1, limit=1
              $region49: #{tpu_custom_call.1} parent=47 // loop_pre_header
                _
              $region50: #{tpu_custom_call.1} parent=47 // loop_header
                %s211 = sphi 0, %s215
                %p212 = scmp.ge.s32.totalorder %s211, 1
                %s216 = sphi %s202, %s202
                %s217 = sphi %s198, %s198
              $region51: #{tpu_custom_call.1} parent=47 // loop_header_branch
                %214 = sbr.rel (%p212) target = $region55
              $region52: #{tpu_custom_call.1} parent=47 // loop_body
                %v218 = vld [vmem:[%s216] sm:$0xf]
                %219 = vst [vmem:[%s217] sm:$0xf] %v218
                %v220 = vld [vmem:[%s216 + $0x8] sm:$0xf]
                %221 = vst [vmem:[%s217 + $0x4] sm:$0xf] %v220
                %v222 = vld [vmem:[%s216 + $0x10] sm:$0xf]
                %223 = vst [vmem:[%s217 + $0x8] sm:$0xf] %v222
                %v224 = vld [vmem:[%s216 + $0x18] sm:$0xf]
                %225 = vst [vmem:[%s217 + $0xc] sm:$0xf] %v224
                %v226 = vld [vmem:[%s216 + $0x20] sm:$0xf]
                %227 = vst [vmem:[%s217 + $0x10] sm:$0xf] %v226
              $region53: #{tpu_custom_call.1} parent=47 // loop_footer
                %s215 = sadd.s32 1, %s211
              $region54: #{tpu_custom_call.1} parent=47 // loop_footer_branch
                %210 = sbr.rel target = $region50
              $region55: #{tpu_custom_call.1} parent=47 // loop_exit
                _
            $region48: #{tpu_custom_call.1} parent=39 // pred_fallthru
              _
          $region40: #{tpu_custom_call.1} parent=35 // pred_fallthru
            _
          %257 = vnop
        $region36: #{tpu_custom_call.1} parent=31 // pred_fallthru
          _
      $region32: #{tpu_custom_call.1} parent=5 // pred_fallthru
        _
      %p258 = scmp.le.s32.totalorder 1, %s11
      %p259 = scmp.lt.s32.totalorder %s11, 5
      %p260 = pnand %p258, %p259
      %p261 = pneg %p260
      // Predicated region
      $region74: #{tpu_custom_call.1} parent=5 // pred_check
        _
      $region75: #{tpu_custom_call.1} parent=5 // pred_check_branch
        %263 = sbr.rel (%p260) target = $region77
      $region76: #{tpu_custom_call.1} parent=5 // pred_region
        %s264 = ssub.s32 %s11, 1
        %s265 = sand.u32 %s38, 1
        %s266 = sand.u32 %s38, 1
        %s267 = smul.addr %s266, 20
        %s268 = scalar_lea.vmem [#allocation3], %s267
        // Predicated region
        $region78: #{tpu_custom_call.1} parent=76 // pred_check
          %p269 = pneg %p51
        $region79: #{tpu_custom_call.1} parent=76 // pred_check_branch
          %271 = sbr.rel (%p269) target = $region81
        $region80: #{tpu_custom_call.1} parent=76 // pred_region
          _
        $region81: #{tpu_custom_call.1} parent=76 // pred_fallthru
          _
        %s272 = sand.u32 %s38, 1
        %s273 = sand.u32 %s38, 1
        %s274 = smul.addr %s273, 20
        %s275 = scalar_lea.vmem [#allocation3], %s274
        %p276 = pneg %p51
        %p277 = pneg %p48
        %p278 = pneg %p72
        %p279 = pneg %p69
        %p280 = pneg %p93
        %p281 = pneg %p90
        %p282 = pneg %p114
        %p283 = pneg %p111
        %p284 = pneg %p135
        %p285 = pneg %p132
        %p286 = pneg %p161
        %p287 = pneg %p158
        %p288 = scmp.lt.s32.totalorder %s20, 1
        %s289 = scalar_select %p288, %s20, 1
        %s290 = smul.addr %s289, 2
        %s291 = smul.addr %s290, 8
        %s292 = scalar_lea.vmem %s5, %s291
        %p293 = scmp.lt.s32.totalorder %s20, 1
        %s294 = scalar_select %p293, %s20, 1
        %s295 = smul.addr %s294, 2
        %s296 = smul.addr %s295, 8
        %s297 = scalar_lea.vmem %s5, %s296
        %p299 = scmp.eq.s32.totalorder %s21, 0
        // Predicated region
        $region82: #{tpu_custom_call.1} parent=76 // pred_check
          %p300 = pneg %p299
        $region83: #{tpu_custom_call.1} parent=76 // pred_check_branch
          %302 = sbr.rel (%p300) target = $region85
        $region84: #{tpu_custom_call.1} parent=76 // pred_region
          %vm303 = vcmask 7168
          %304 = vst.msk [vmem:[#allocation2] sm:$0xff] %vm303, 0.0
          %305 = vst.msk [vmem:[#allocation2 + $0x8] sm:$0xff] %vm303, 0.0
          %306 = vst.msk [vmem:[#allocation2 + $0x10] sm:$0xff] %vm303, 0.0
          %307 = vst.msk [vmem:[#allocation2 + $0x18] sm:$0xff] %vm303, 0.0
          %308 = vst.msk [vmem:[#allocation2 + $0x20] sm:$0xff] %vm303, 0.0
          %309 = vst.msk [vmem:[#allocation2 + $0x28] sm:$0xff] %vm303, 0.0
          %310 = vst.msk [vmem:[#allocation2 + $0x30] sm:$0xff] %vm303, 0.0
          %311 = vst.msk [vmem:[#allocation2 + $0x38] sm:$0xff] %vm303, 0.0
          %312 = vst.msk [vmem:[#allocation2 + $0x40] sm:$0xff] %vm303, 0.0
          %313 = vst.msk [vmem:[#allocation2 + $0x48] sm:$0xff] %vm303, 0.0
          %314 = vst.msk [vmem:[#allocation2 + $0x50] sm:$0xff] %vm303, 0.0
          %315 = vst.msk [vmem:[#allocation2 + $0x58] sm:$0xff] %vm303, 0.0
          %316 = vst.msk [vmem:[#allocation2 + $0x60] sm:$0xff] %vm303, 0.0
          %317 = vst.msk [vmem:[#allocation2 + $0x68] sm:$0xff] %vm303, 0.0
          %318 = vst.msk [vmem:[#allocation2 + $0x70] sm:$0xff] %vm303, 0.0
          %319 = vst.msk [vmem:[#allocation2 + $0x78] sm:$0xff] %vm303, 0.0
        $region85: #{tpu_custom_call.1} parent=76 // pred_fallthru
          _
        %v320 = vld [vmem:[%s1] sm:$0xf]
        %v321 = vld [vmem:[%s1 + $0x4] sm:$0xf]
        %v322 = vld [vmem:[%s1 + $0x8] sm:$0xf]
        %v323 = vld [vmem:[%s1 + $0xc] sm:$0xf]
        %v324 = vld [vmem:[%s1 + $0x10] sm:$0xf]
        %v325 = vld [vmem:[%s1 + $0x14] sm:$0xf]
        %v326 = vld [vmem:[%s1 + $0x18] sm:$0xf]
        %v327 = vld [vmem:[%s1 + $0x1c] sm:$0xf]
        %v328 = vld [vmem:[%s1 + $0x20] sm:$0xf]
        %v329 = vld [vmem:[%s1 + $0x24] sm:$0xf]
        %v330 = vld [vmem:[%s1 + $0x28] sm:$0xf]
        %v331 = vld [vmem:[%s1 + $0x2c] sm:$0xf]
        %v332 = vld [vmem:[%s1 + $0x30] sm:$0xf]
        %v333 = vld [vmem:[%s1 + $0x34] sm:$0xf]
        %v334 = vld [vmem:[%s1 + $0x38] sm:$0xf]
        %v335 = vld [vmem:[%s1 + $0x3c] sm:$0xf]
        %v336 = vld [vmem:[%s268] sm:$0xf]
        %v337 = vld [vmem:[%s268 + $0x4] sm:$0xf]
        %v338 = vld [vmem:[%s268 + $0x8] sm:$0xf]
        %v339 = vld [vmem:[%s268 + $0xc] sm:$0xf]
        %v340 = vld [vmem:[%s268 + $0x10] sm:$0x3]
        %v341 = vld [vmem:[%s2] sm:$0xff]
        %v342 = vld [vmem:[%s2 + $0x8] sm:$0xff]
        %v343 = vld [vmem:[%s2 + $0x10] sm:$0xff]
        %v344 = vld [vmem:[%s2 + $0x18] sm:$0xff]
        %v345 = vld [vmem:[%s2 + $0x20] sm:$0xff]
        %v346 = vld [vmem:[%s2 + $0x28] sm:$0xff]
        %v347 = vld [vmem:[%s2 + $0x30] sm:$0xff]
        %v348 = vld [vmem:[%s2 + $0x38] sm:$0xff]
        %v349 = vld [vmem:[%s2 + $0x40] sm:$0xff]
        %v350 = vld [vmem:[%s2 + $0x48] sm:$0xff]
        %v351 = vld [vmem:[%s2 + $0x50] sm:$0xff]
        %v352 = vld [vmem:[%s2 + $0x58] sm:$0xff]
        %v353 = vld [vmem:[%s2 + $0x60] sm:$0xff]
        %v354 = vld [vmem:[%s2 + $0x68] sm:$0xff]
        %v355 = vld [vmem:[%s2 + $0x70] sm:$0xff]
        %v356 = vld [vmem:[%s2 + $0x78] sm:$0xff]
        %358 = vset.pattern.permute.xlu0 0
        %359 = vperm.xlu0 %358, %v341
        %v360 = vpop.permute.xlu0 %359
        %363 = vset.pattern.permute.xlu0 0
        %364 = vperm.xlu0 %363, %v342
        %v365 = vpop.permute.xlu0 %364
        %368 = vset.pattern.permute.xlu0 0
        %369 = vperm.xlu0 %368, %v343
        %v370 = vpop.permute.xlu0 %369
        %373 = vset.pattern.permute.xlu0 0
        %374 = vperm.xlu0 %373, %v344
        %v375 = vpop.permute.xlu0 %374
        %378 = vset.pattern.permute.xlu0 0
        %379 = vperm.xlu0 %378, %v345
        %v380 = vpop.permute.xlu0 %379
        %383 = vset.pattern.permute.xlu0 0
        %384 = vperm.xlu0 %383, %v346
        %v385 = vpop.permute.xlu0 %384
        %388 = vset.pattern.permute.xlu0 0
        %389 = vperm.xlu0 %388, %v347
        %v390 = vpop.permute.xlu0 %389
        %393 = vset.pattern.permute.xlu0 0
        %394 = vperm.xlu0 %393, %v348
        %v395 = vpop.permute.xlu0 %394
        %398 = vset.pattern.permute.xlu0 0
        %399 = vperm.xlu0 %398, %v349
        %v400 = vpop.permute.xlu0 %399
        %403 = vset.pattern.permute.xlu0 0
        %404 = vperm.xlu0 %403, %v350
        %v405 = vpop.permute.xlu0 %404
        %408 = vset.pattern.permute.xlu0 0
        %409 = vperm.xlu0 %408, %v351
        %v410 = vpop.permute.xlu0 %409
        %413 = vset.pattern.permute.xlu0 0
        %414 = vperm.xlu0 %413, %v352
        %v415 = vpop.permute.xlu0 %414
        %418 = vset.pattern.permute.xlu0 0
        %419 = vperm.xlu0 %418, %v353
        %v420 = vpop.permute.xlu0 %419
        %423 = vset.pattern.permute.xlu0 0
        %424 = vperm.xlu0 %423, %v354
        %v425 = vpop.permute.xlu0 %424
        %428 = vset.pattern.permute.xlu0 0
        %429 = vperm.xlu0 %428, %v355
        %v430 = vpop.permute.xlu0 %429
        %433 = vset.pattern.permute.xlu0 0
        %434 = vperm.xlu0 %433, %v356
        %v435 = vpop.permute.xlu0 %434
        %v453 = vunpack.c.l.b16 %v320
        %v454 = vunpack.c.l.b16 %v321
        %v455 = vunpack.c.l.b16 %v322
        %v456 = vunpack.c.l.b16 %v323
        %v457 = vunpack.c.l.b16 %v324
        %v458 = vunpack.c.l.b16 %v325
        %v459 = vunpack.c.l.b16 %v326
        %v460 = vunpack.c.l.b16 %v327
        %v461 = vunpack.c.l.b16 %v328
        %v462 = vunpack.c.l.b16 %v329
        %v463 = vunpack.c.l.b16 %v330
        %v464 = vunpack.c.l.b16 %v331
        %v465 = vunpack.c.l.b16 %v332
        %v466 = vunpack.c.l.b16 %v333
        %v467 = vunpack.c.l.b16 %v334
        %v468 = vunpack.c.l.b16 %v335
        %v469 = vpack.c.b16 %v454, %v453
        %v470 = vpack.c.b16 %v456, %v455
        %v471 = vpack.c.b16 %v458, %v457
        %v472 = vpack.c.b16 %v460, %v459
        %v473 = vpack.c.b16 %v462, %v461
        %v474 = vpack.c.b16 %v464, %v463
        %v475 = vpack.c.b16 %v466, %v465
        %v476 = vpack.c.b16 %v468, %v467
        %v482 = vunpack.c.l.b16 %v336
        %v483 = vunpack.c.l.b16 %v337
        %v484 = vunpack.c.l.b16 %v338
        %v485 = vunpack.c.l.b16 %v339
        %v486 = vunpack.c.l.b16 %v340
        %v487 = vpack.c.b16 %v483, %v482
        %v488 = vpack.c.b16 %v485, %v484
        %v489 = vpack.c.b16 %v486, %v486
        %vm492 = vcmask 293888
        %v494 = vsel %vm492, %v469, 0
        %v497 = vsel %vm492, %v470, 0
        %v500 = vsel %vm492, %v471, 0
        %v503 = vsel %vm492, %v472, 0
        %v506 = vsel %vm492, %v473, 0
        %v509 = vsel %vm492, %v474, 0
        %v512 = vsel %vm492, %v475, 0
        %v515 = vsel %vm492, %v476, 0
        %vm517 = vcmask 1041408
        %v519 = vsel %vm517, %v489, 0
        %521 = vmatprep.subr.bf16.mxu0 0
        %522 = vmatpush1.bf16.msra.mxu0 %v487
        %523 = vmatprep.subr.bf16.mxu0 0
        %524 = vmatpush1.bf16.msra.mxu0 %v488
        %525 = vmatprep.subr.bf16.mxu0 0
        %526 = vmatpush1.bf16.msra.mxu0 %v519
        %527 = vmatprep.subr.bf16.mxu0 0
        %528 = vmatpush1.bf16.msra.mxu0 0
        %529 = vmatprep.subr.bf16.mxu0 0
        %530 = vmatpush1.bf16.msra.mxu0 0
        %531 = vmatprep.subr.bf16.mxu0 0
        %532 = vmatpush1.bf16.msra.mxu0 0
        %533 = vmatprep.subr.bf16.mxu0 0
        %534 = vmatpush1.bf16.msra.mxu0 0
        %535 = vmatprep.subr.bf16.mxu0 0
        %536 = vmatpush1.bf16.msra.mxu0 0
        %537 = vmatprep.subr.bf16.mxu0 0
        %538 = vmatpush1.bf16.msra.mxu0 0
        %539 = vmatprep.subr.bf16.mxu0 0
        %540 = vmatpush1.bf16.msra.mxu0 0
        %541 = vmatprep.subr.bf16.mxu0 0
        %542 = vmatpush1.bf16.msra.mxu0 0
        %543 = vmatprep.subr.bf16.mxu0 0
        %544 = vmatpush1.bf16.msra.mxu0 0
        %545 = vmatprep.subr.bf16.mxu0 0
        %546 = vmatpush1.bf16.msra.mxu0 0
        %547 = vmatprep.subr.bf16.mxu0 0
        %548 = vmatpush1.bf16.msra.mxu0 0
        %549 = vmatprep.subr.bf16.mxu0 0
        %550 = vmatpush1.bf16.msra.mxu0 0
        %551 = vmatprep.subr.bf16.mxu0 0
        %552 = vmatpush1.bf16.msra.mxu0 0
        %553 = vmatprep.mubr.bf16.mxu0 0
        %554 = vmatmul.mubr.bf16.gmra.mrb[0].mxu0 %v494
        %v555 = vpop.f32.mrb[0].mxu0
        %v556 = vadd.f32 %v360, %v555
        %v557 = vpop.f32.mrb[0].mxu0
        %v558 = vpop.f32.mrb[0].mxu0
        %v559 = vadd.f32 %v365, %v558
        %v560 = vpop.f32.mrb[0].mxu0
        %561 = vmatprep.mubr.bf16.mxu0 0
        %562 = vmatmul.mubr.bf16.gmra.mrb[0].mxu0 %v497
        %v563 = vpop.f32.mrb[0].mxu0
        %v564 = vadd.f32 %v370, %v563
        %v565 = vpop.f32.mrb[0].mxu0
        %v566 = vpop.f32.mrb[0].mxu0
        %v567 = vadd.f32 %v375, %v566
        %v568 = vpop.f32.mrb[0].mxu0
        %569 = vmatprep.mubr.bf16.mxu0 0
        %570 = vmatmul.mubr.bf16.gmra.mrb[0].mxu0 %v500
        %v571 = vpop.f32.mrb[0].mxu0
        %v572 = vadd.f32 %v380, %v571
        %v573 = vpop.f32.mrb[0].mxu0
        %v574 = vpop.f32.mrb[0].mxu0
        %v575 = vadd.f32 %v385, %v574
        %v576 = vpop.f32.mrb[0].mxu0
        %577 = vmatprep.mubr.bf16.mxu0 0
        %578 = vmatmul.mubr.bf16.gmra.mrb[0].mxu0 %v503
        %v579 = vpop.f32.mrb[0].mxu0
        %v580 = vadd.f32 %v390, %v579
        %v581 = vpop.f32.mrb[0].mxu0
        %v582 = vpop.f32.mrb[0].mxu0
        %v583 = vadd.f32 %v395, %v582
        %v584 = vpop.f32.mrb[0].mxu0
        %585 = vmatprep.mubr.bf16.mxu0 0
        %586 = vmatmul.mubr.bf16.gmra.mrb[0].mxu0 %v506
        %v587 = vpop.f32.mrb[0].mxu0
        %v588 = vadd.f32 %v400, %v587
        %v589 = vpop.f32.mrb[0].mxu0
        %v590 = vpop.f32.mrb[0].mxu0
        %v591 = vadd.f32 %v405, %v590
        %v592 = vpop.f32.mrb[0].mxu0
        %593 = vmatprep.mubr.bf16.mxu0 0
        %594 = vmatmul.mubr.bf16.gmra.mrb[0].mxu0 %v509
        %v595 = vpop.f32.mrb[0].mxu0
        %v596 = vadd.f32 %v410, %v595
        %v597 = vpop.f32.mrb[0].mxu0
        %v598 = vpop.f32.mrb[0].mxu0
        %v599 = vadd.f32 %v415, %v598
        %v600 = vpop.f32.mrb[0].mxu0
        %601 = vmatprep.mubr.bf16.mxu0 0
        %602 = vmatmul.mubr.bf16.gmra.mrb[0].mxu0 %v512
        %v603 = vpop.f32.mrb[0].mxu0
        %v604 = vadd.f32 %v420, %v603
        %v605 = vpop.f32.mrb[0].mxu0
        %v606 = vpop.f32.mrb[0].mxu0
        %v607 = vadd.f32 %v425, %v606
        %v608 = vpop.f32.mrb[0].mxu0
        %609 = vmatprep.mubr.bf16.mxu0 0
        %610 = vmatmul.mubr.bf16.gmra.mrb[0].mxu0 %v515
        %v611 = vpop.f32.mrb[0].mxu0
        %v612 = vadd.f32 %v430, %v611
        %v613 = vpop.f32.mrb[0].mxu0
        %v614 = vpop.f32.mrb[0].mxu0
        %v615 = vadd.f32 %v435, %v614
        %v616 = vpop.f32.mrb[0].mxu0
        %617 = vdwg.mxu0
        %v618 = vmax.f32 %v556, 0.0
        %v619 = vmax.f32 %v559, 0.0
        %v620 = vmax.f32 %v564, 0.0
        %v621 = vmax.f32 %v567, 0.0
        %v622 = vmax.f32 %v572, 0.0
        %v623 = vmax.f32 %v575, 0.0
        %v624 = vmax.f32 %v580, 0.0
        %v625 = vmax.f32 %v583, 0.0
        %v626 = vmax.f32 %v588, 0.0
        %v627 = vmax.f32 %v591, 0.0
        %v628 = vmax.f32 %v596, 0.0
        %v629 = vmax.f32 %v599, 0.0
        %v630 = vmax.f32 %v604, 0.0
        %v631 = vmax.f32 %v607, 0.0
        %v632 = vmax.f32 %v612, 0.0
        %v633 = vmax.f32 %v615, 0.0
        %v634 = vld [vmem:[#allocation2] sm:$0xff]
        %v635 = vld [vmem:[#allocation2 + $0x8] sm:$0xff]
        %v636 = vld [vmem:[#allocation2 + $0x10] sm:$0xff]
        %v637 = vld [vmem:[#allocation2 + $0x18] sm:$0xff]
        %v638 = vld [vmem:[#allocation2 + $0x20] sm:$0xff]
        %v639 = vld [vmem:[#allocation2 + $0x28] sm:$0xff]
        %v640 = vld [vmem:[#allocation2 + $0x30] sm:$0xff]
        %v641 = vld [vmem:[#allocation2 + $0x38] sm:$0xff]
        %v642 = vld [vmem:[#allocation2 + $0x40] sm:$0xff]
        %v643 = vld [vmem:[#allocation2 + $0x48] sm:$0xff]
        %v644 = vld [vmem:[#allocation2 + $0x50] sm:$0xff]
        %v645 = vld [vmem:[#allocation2 + $0x58] sm:$0xff]
        %v646 = vld [vmem:[#allocation2 + $0x60] sm:$0xff]
        %v647 = vld [vmem:[#allocation2 + $0x68] sm:$0xff]
        %v648 = vld [vmem:[#allocation2 + $0x70] sm:$0xff]
        %v649 = vld [vmem:[#allocation2 + $0x78] sm:$0xff]
        %650 = vadd.xlane.f32.xlu0 %v618
        %v651 = vpop.xlane.xlu0 %650
        %652 = vadd.xlane.f32.xlu0 %v619
        %v653 = vpop.xlane.xlu0 %652
        %654 = vadd.xlane.f32.xlu0 %v620
        %v655 = vpop.xlane.xlu0 %654
        %656 = vadd.xlane.f32.xlu0 %v621
        %v657 = vpop.xlane.xlu0 %656
        %658 = vadd.xlane.f32.xlu0 %v622
        %v659 = vpop.xlane.xlu0 %658
        %660 = vadd.xlane.f32.xlu0 %v623
        %v661 = vpop.xlane.xlu0 %660
        %662 = vadd.xlane.f32.xlu0 %v624
        %v663 = vpop.xlane.xlu0 %662
        %664 = vadd.xlane.f32.xlu0 %v625
        %v665 = vpop.xlane.xlu0 %664
        %666 = vadd.xlane.f32.xlu0 %v626
        %v667 = vpop.xlane.xlu0 %666
        %668 = vadd.xlane.f32.xlu0 %v627
        %v669 = vpop.xlane.xlu0 %668
        %670 = vadd.xlane.f32.xlu0 %v628
        %v671 = vpop.xlane.xlu0 %670
        %672 = vadd.xlane.f32.xlu0 %v629
        %v673 = vpop.xlane.xlu0 %672
        %674 = vadd.xlane.f32.xlu0 %v630
        %v675 = vpop.xlane.xlu0 %674
        %676 = vadd.xlane.f32.xlu0 %v631
        %v677 = vpop.xlane.xlu0 %676
        %678 = vadd.xlane.f32.xlu0 %v632
        %v679 = vpop.xlane.xlu0 %678
        %680 = vadd.xlane.f32.xlu0 %v633
        %v681 = vpop.xlane.xlu0 %680
        %v682 = vadd.f32 %v634, %v651
        %v683 = vadd.f32 %v635, %v653
        %v684 = vadd.f32 %v636, %v655
        %v685 = vadd.f32 %v637, %v657
        %v686 = vadd.f32 %v638, %v659
        %v687 = vadd.f32 %v639, %v661
        %v688 = vadd.f32 %v640, %v663
        %v689 = vadd.f32 %v641, %v665
        %v690 = vadd.f32 %v642, %v667
        %v691 = vadd.f32 %v643, %v669
        %v692 = vadd.f32 %v644, %v671
        %v693 = vadd.f32 %v645, %v673
        %v694 = vadd.f32 %v646, %v675
        %v695 = vadd.f32 %v647, %v677
        %v696 = vadd.f32 %v648, %v679
        %v697 = vadd.f32 %v649, %v681
        %vm698 = vcmask 7168
        %699 = vst.msk [vmem:[#allocation2] sm:$0xff] %vm698, %v682
        %700 = vst.msk [vmem:[#allocation2 + $0x8] sm:$0xff] %vm698, %v683
        %701 = vst.msk [vmem:[#allocation2 + $0x10] sm:$0xff] %vm698, %v684
        %702 = vst.msk [vmem:[#allocation2 + $0x18] sm:$0xff] %vm698, %v685
        %703 = vst.msk [vmem:[#allocation2 + $0x20] sm:$0xff] %vm698, %v686
        %704 = vst.msk [vmem:[#allocation2 + $0x28] sm:$0xff] %vm698, %v687
        %705 = vst.msk [vmem:[#allocation2 + $0x30] sm:$0xff] %vm698, %v688
        %706 = vst.msk [vmem:[#allocation2 + $0x38] sm:$0xff] %vm698, %v689
        %707 = vst.msk [vmem:[#allocation2 + $0x40] sm:$0xff] %vm698, %v690
        %708 = vst.msk [vmem:[#allocation2 + $0x48] sm:$0xff] %vm698, %v691
        %709 = vst.msk [vmem:[#allocation2 + $0x50] sm:$0xff] %vm698, %v692
        %710 = vst.msk [vmem:[#allocation2 + $0x58] sm:$0xff] %vm698, %v693
        %711 = vst.msk [vmem:[#allocation2 + $0x60] sm:$0xff] %vm698, %v694
        %712 = vst.msk [vmem:[#allocation2 + $0x68] sm:$0xff] %vm698, %v695
        %713 = vst.msk [vmem:[#allocation2 + $0x70] sm:$0xff] %vm698, %v696
        %714 = vst.msk [vmem:[#allocation2 + $0x78] sm:$0xff] %vm698, %v697
        %p715 = scmp.eq.s32.totalorder %s21, 1
        // Predicated region
        $region86: #{tpu_custom_call.1} parent=76 // pred_check
          %p716 = pneg %p715
        $region87: #{tpu_custom_call.1} parent=76 // pred_check_branch
          %718 = sbr.rel (%p716) target = $region89
        $region88: #{tpu_custom_call.1} parent=76 // pred_region
          %v719 = vld [vmem:[#allocation2] sm:$0xff]
          %v720 = vld [vmem:[#allocation2 + $0x8] sm:$0xff]
          %v721 = vld [vmem:[#allocation2 + $0x10] sm:$0xff]
          %v722 = vld [vmem:[#allocation2 + $0x18] sm:$0xff]
          %v723 = vld [vmem:[#allocation2 + $0x20] sm:$0xff]
          %v724 = vld [vmem:[#allocation2 + $0x28] sm:$0xff]
          %v725 = vld [vmem:[#allocation2 + $0x30] sm:$0xff]
          %v726 = vld [vmem:[#allocation2 + $0x38] sm:$0xff]
          %v727 = vld [vmem:[#allocation2 + $0x40] sm:$0xff]
          %v728 = vld [vmem:[#allocation2 + $0x48] sm:$0xff]
          %v729 = vld [vmem:[#allocation2 + $0x50] sm:$0xff]
          %v730 = vld [vmem:[#allocation2 + $0x58] sm:$0xff]
          %v731 = vld [vmem:[#allocation2 + $0x60] sm:$0xff]
          %v732 = vld [vmem:[#allocation2 + $0x68] sm:$0xff]
          %v733 = vld [vmem:[#allocation2 + $0x70] sm:$0xff]
          %v734 = vld [vmem:[#allocation2 + $0x78] sm:$0xff]
          %v735 = vmul.f32 %v719, 0.00390625
          %v736 = vmul.f32 %v720, 0.00390625
          %v737 = vmul.f32 %v721, 0.00390625
          %v738 = vmul.f32 %v722, 0.00390625
          %v739 = vmul.f32 %v723, 0.00390625
          %v740 = vmul.f32 %v724, 0.00390625
          %v741 = vmul.f32 %v725, 0.00390625
          %v742 = vmul.f32 %v726, 0.00390625
          %v743 = vmul.f32 %v727, 0.00390625
          %v744 = vmul.f32 %v728, 0.00390625
          %v745 = vmul.f32 %v729, 0.00390625
          %v746 = vmul.f32 %v730, 0.00390625
          %v747 = vmul.f32 %v731, 0.00390625
          %v748 = vmul.f32 %v732, 0.00390625
          %v749 = vmul.f32 %v733, 0.00390625
          %v750 = vmul.f32 %v734, 0.00390625
          %v751 = vld [vmem:[%s3] sm:$0xff]
          %v752 = vld [vmem:[%s3 + $0x8] sm:$0xff]
          %v753 = vld [vmem:[%s4] sm:$0xff]
          %v754 = vld [vmem:[%s4 + $0x8] sm:$0xff]
          %755 = vmatprep.subr.mxu0 0.0
          %756 = vmatpush1.msra.mxu0 %v735
          %757 = vmatprep.subr.mxu0 0.0
          %758 = vmatpush1.msra.mxu0 %v736
          %759 = vmatprep.subr.mxu0 0.0
          %760 = vmatpush1.msra.mxu0 %v737
          %761 = vmatprep.subr.mxu0 0.0
          %762 = vmatpush1.msra.mxu0 %v738
          %763 = vmatprep.subr.mxu0 0.0
          %764 = vmatpush1.msra.mxu0 %v739
          %765 = vmatprep.subr.mxu0 0.0
          %766 = vmatpush1.msra.mxu0 %v740
          %767 = vmatprep.subr.mxu0 0.0
          %768 = vmatpush1.msra.mxu0 %v741
          %769 = vmatprep.subr.mxu0 0.0
          %770 = vmatpush1.msra.mxu0 %v742
          %771 = vmatprep.subr.mxu0 0.0
          %772 = vmatpush1.msra.mxu0 %v743
          %773 = vmatprep.subr.mxu0 0.0
          %774 = vmatpush1.msra.mxu0 %v744
          %775 = vmatprep.subr.mxu0 0.0
          %776 = vmatpush1.msra.mxu0 %v745
          %777 = vmatprep.subr.mxu0 0.0
          %778 = vmatpush1.msra.mxu0 %v746
          %779 = vmatprep.subr.mxu0 0.0
          %780 = vmatpush1.msra.mxu0 %v747
          %781 = vmatprep.subr.mxu0 0.0
          %782 = vmatpush1.msra.mxu0 %v748
          %783 = vmatprep.subr.mxu0 0.0
          %784 = vmatpush1.msra.mxu0 %v749
          %785 = vmatprep.subr.mxu0 0.0
          %786 = vmatpush1.msra.mxu0 %v750
          %787 = vmatprep.subr.mxu0 0.0
          %788 = vmatpush1.msra.mxu0 0.0
          %789 = vmatprep.subr.mxu0 0.0
          %790 = vmatpush1.msra.mxu0 0.0
          %791 = vmatprep.subr.mxu0 0.0
          %792 = vmatpush1.msra.mxu0 0.0
          %793 = vmatprep.subr.mxu0 0.0
          %794 = vmatpush1.msra.mxu0 0.0
          %795 = vmatprep.subr.mxu0 0.0
          %796 = vmatpush1.msra.mxu0 0.0
          %797 = vmatprep.subr.mxu0 0.0
          %798 = vmatpush1.msra.mxu0 0.0
          %799 = vmatprep.subr.mxu0 0.0
          %800 = vmatpush1.msra.mxu0 0.0
          %801 = vmatprep.subr.mxu0 0.0
          %802 = vmatpush1.msra.mxu0 0.0
          %803 = vmatprep.subr.mxu0 0.0
          %804 = vmatpush1.msra.mxu0 0.0
          %805 = vmatprep.subr.mxu0 0.0
          %806 = vmatpush1.msra.mxu0 0.0
          %807 = vmatprep.subr.mxu0 0.0
          %808 = vmatpush1.msra.mxu0 0.0
          %809 = vmatprep.subr.mxu0 0.0
          %810 = vmatpush1.msra.mxu0 0.0
          %811 = vmatprep.subr.mxu0 0.0
          %812 = vmatpush1.msra.mxu0 0.0
          %813 = vmatprep.subr.mxu0 0.0
          %814 = vmatpush1.msra.mxu0 0.0
          %815 = vmatprep.subr.mxu0 0.0
          %816 = vmatpush1.msra.mxu0 0.0
          %817 = vmatprep.subr.mxu0 0.0
          %818 = vmatpush1.msra.mxu0 0.0
          %819 = vmatprep.mubr.f32.mxu0 0.0
          %820 = vmatmul.mubr.f32.gmra.mrb[0].mxu0 %v751
          %v821 = vpop.f32.mrb[0].mxu0
          %v822 = vadd.f32 %v753, %v821
          %v823 = vpop.f32.mrb[0].mxu0
          %824 = vmatprep.mubr.f32.mxu0 0.0
          %825 = vmatmul.mubr.f32.gmra.mrb[0].mxu0 %v752
          %v826 = vpop.f32.mrb[0].mxu0
          %v827 = vadd.f32 %v754, %v826
          %v828 = vpop.f32.mrb[0].mxu0
          %829 = vdwg.mxu0
          %830 = vst.msk [vmem:[%s297] sm:$0xff] %vm698, %v822
          %831 = vst.msk [vmem:[%s297 + $0x8] sm:$0xff] %vm698, %v827
        $region89: #{tpu_custom_call.1} parent=76 // pred_fallthru
          _
        %p832 = scmp.lt.s32.totalorder %s20, 1
        %s833 = scalar_select %p832, %s20, 1
        %s834 = smul.addr %s833, 2
        %s835 = smul.addr %s834, 8
        %s836 = scalar_lea.vmem %s5, %s835
        // Predicated region
        $region90: #{tpu_custom_call.1} parent=76 // pred_check
          %p837 = pneg %p158
        $region91: #{tpu_custom_call.1} parent=76 // pred_check_branch
          %839 = sbr.rel (%p837) target = $region93
        $region92: #{tpu_custom_call.1} parent=76 // pred_region
          _
        $region93: #{tpu_custom_call.1} parent=76 // pred_fallthru
          _
      $region77: #{tpu_custom_call.1} parent=5 // pred_fallthru
        _
      %p840 = scmp.le.s32.totalorder 2, %s11
      // Predicated region
      $region94: #{tpu_custom_call.1} parent=5 // pred_check
        %p841 = pneg %p840
      $region95: #{tpu_custom_call.1} parent=5 // pred_check_branch
        %843 = sbr.rel (%p841) target = $region97
      $region96: #{tpu_custom_call.1} parent=5 // pred_region
        %s844 = ssub.s32 %s11, 2
        // Predicated region
        $region98: #{tpu_custom_call.1} parent=96 // pred_check
          %p845 = pneg %p164
        $region99: #{tpu_custom_call.1} parent=96 // pred_check_branch
          %847 = sbr.rel (%p845) target = $region101
        $region100: #{tpu_custom_call.1} parent=96 // pred_region
          %p848 = scmp.lt.s32.totalorder %s22, 1
          %s849 = scalar_select %p848, %s22, 1
          %s850 = smul.addr %s849, 2
          %s851 = smul.addr %s850, 8
          %s852 = scalar_lea.vmem %s5, %s851
        $region101: #{tpu_custom_call.1} parent=96 // pred_fallthru
          _
      $region97: #{tpu_custom_call.1} parent=5 // pred_fallthru
        _
    $region6: #{tpu_custom_call.1} parent=1 // loop_footer
      %s15 = sadd.s32 1, %s11
    $region7: #{tpu_custom_call.1} parent=1 // loop_footer_branch
      %10 = sbr.rel target = $region3
    $region8: #{tpu_custom_call.1} parent=1 // loop_exit
      _

</llo_original>
